<compile_context>
chip_gen: v5e
topology: v5e:2x2
jax: 0.10.0
libtpu: 0.0.40
codegen_flags: <defaults>
</compile_context>

<pallas_src>
import jax
import jax.numpy as jnp
from jax.experimental import pallas as pl
from jax.experimental.pallas import tpu as pltpu

_LANE = 128
_SUBLANE_F32 = 8
_SUBLANE_PACKED = 16   # bf16 packs 16 rows per vreg sublane group


def _round_up(x, m):
    return (x + m - 1) // m * m


def _vmem_capacity_bytes():
    """Physical per-core VMEM (generation aware); conservative fallback."""
    try:
        return int(pltpu.get_tpu_info().vmem_capacity_bytes)
    except Exception:
        return 64 * 1024 * 1024   # v7x per-TC VMEM (smallest current gen)


def mlp_kernel(x_ref, w1_ref, b1_ref, w2_ref, b2_ref, o_ref, acc_ref):
    """One (batch-tile, hidden-tile) grid step of
       y = ReLU(ReLU(x @ W1 + b1) @ W2 + b2).

    Hidden dim is the innermost ("arbitrary") grid axis.  fc1's ReLU is
    column-wise, so each hidden chunk's activation is exact; its fc2
    contribution is accumulated into the f32 scratch, and b2 + the final ReLU
    are applied once on the last hidden step.
    """
    k = pl.program_id(1)

    @pl.when(k == 0)
    def _init():
        acc_ref[...] = jnp.zeros_like(acc_ref)

    # fc1 chunk: MXU matmul, f32 accumulation, f32 bias + ReLU epilogue (VPU).
    h = jnp.dot(x_ref[...], w1_ref[...], preferred_element_type=jnp.float32)
    h = jnp.maximum(h + b1_ref[...], 0.0)
    # Downcast the intermediate to the operand dtype so fc2 also runs with
    # (possibly bf16) MXU operands / f32 accumulation.  Exact when the compute
    # dtype is f32; documented accuracy/speed trade-off for bf16.
    h = h.astype(w2_ref.dtype)

    # fc2 chunk contribution, accumulated in f32.
    acc_ref[...] += jnp.dot(h, w2_ref[...], preferred_element_type=jnp.float32)

    @pl.when(k == pl.num_programs(1) - 1)
    def _finalize():
        o_ref[...] = jnp.maximum(acc_ref[...] + b2_ref[...], 0.0).astype(o_ref.dtype)


def _choose_tiles(B, Dp, Hp, Op, op_itemsize, out_itemsize, vmem_budget):
    """Pick (TB, TH): batch tile and hidden tile.

    Keep TB as large as possible (512/256 fill the 256x256 MXUs on v6e/v7x;
    128 is full width on v5e) and shrink TH instead when VMEM is tight.  TB is
    capped so the batch grid has >=2 steps whenever B permits (dual-TC
    sharding on v7x) and is a multiple of 16 for sub-32-bit operands.
    """
    sub = _SUBLANE_PACKED if op_itemsize < 4 else _SUBLANE_F32
    two_tile_cap = max(sub, _round_up(-(-B // 2), sub))
    tb_cands = [t for t in (512, 256, 128, 64, 32, 16, 8)
                if t % sub == 0 and t <= two_tile_cap]
    if not tb_cands:
        tb_cands = [sub]
    th_cands = [t for t in range(Hp, 0, -_LANE) if Hp % t == 0]

    def fits(tb, th):
        grid_k = Hp // th
        buf_w = 1 if grid_k == 1 else 2          # resident weights single-buffered
        est = (2 * tb * Dp * op_itemsize         # x tile (double-buffered)
               + buf_w * Dp * th * op_itemsize   # W1 chunk
               + buf_w * _SUBLANE_F32 * th * 4   # b1 chunk (f32)
               + buf_w * th * Op * op_itemsize   # W2 chunk
               + _SUBLANE_F32 * Op * 4           # b2 (constant, 1 buffer)
               + 2 * tb * Op * out_itemsize      # out tile (double-buffered)
               + tb * Op * 4                     # f32 accumulator scratch
               + tb * th * (4 + op_itemsize))    # fc1 intermediate (+cast copy)
        return est <= vmem_budget

    for tb in tb_cands:
        for th in th_cands:
            if fits(tb, th):
                return tb, th
    return tb_cands[-1], _LANE


def prepare_mlp_params(w1, b1, w2, b2, *, compute_dtype=None):
    """Pad/cast weights ONCE (hoisted out of the per-call path; cache this).

    w1: (D_in, H), b1: (H,), w2: (H, D_out), b2: (D_out,) -- already stored as
    (in_features, out_features) so the hot path is plain `x @ W + b` on the MXU.

    compute_dtype=jnp.bfloat16 is recommended on ALL TPU generations
    (v5e/v6e/v7x MXUs are bf16-native; halves weight/activation HBM+VMEM
    traffic).  Biases are kept f32 for the VPU epilogue.  Zero-padded W/b
    columns keep padded lanes inert (ReLU(0) = 0).
    """
    D_in, H = w1.shape
    H2, D_out = w2.shape
    assert H2 == H
    cdtype = jnp.dtype(compute_dtype if compute_dtype is not None else w1.dtype)
    Dp, Hp, Op = (_round_up(D_in, _LANE), _round_up(H, _LANE), _round_up(D_out, _LANE))

    def pad2(w, shape):
        if w.shape == shape:
            return w if w.dtype == cdtype else w.astype(cdtype)
        return jnp.zeros(shape, cdtype).at[:w.shape[0], :w.shape[1]].set(w.astype(cdtype))

    def pad_bias(b, n):
        bf = b.astype(jnp.float32)
        if b.shape[0] == n:
            return bf.reshape(1, n)
        return jnp.zeros((1, n), jnp.float32).at[0, :b.shape[0]].set(bf)

    return dict(
        w1=pad2(w1, (Dp, Hp)), b1=pad_bias(b1, Hp),
        w2=pad2(w2, (Hp, Op)), b2=pad_bias(b2, Op),
        dims=(D_in, H, D_out), compute_dtype=cdtype,
    )


def mlp_forward(x, params, *, out_dtype=None):
    """y = ReLU(ReLU(x @ W1 + b1) @ W2 + b2) via a fused Pallas TPU kernel.

    x: (B, input_dim); params from prepare_mlp_params().  Pass
    out_dtype=jnp.bfloat16 to halve output store/DMA traffic if the consumer
    tolerates bf16 (default keeps x.dtype).
    """
    B, D_in = x.shape
    d_in, H, D_out = params["dims"]
    assert D_in == d_in, "input feature dim mismatch"
    cdtype = params["compute_dtype"]
    out_dtype = jnp.dtype(out_dtype if out_dtype is not None else x.dtype)

    w1p, b1p, w2p, b2p = params["w1"], params["b1"], params["w2"], params["b2"]
    Dp, Hp = w1p.shape
    Op = w2p.shape[1]

    op_itemsize = jnp.dtype(cdtype).itemsize
    vmem_cap = _vmem_capacity_bytes()
    vmem_budget = (vmem_cap * 3) // 4            # headroom for compiler scratch
    TB, TH = _choose_tiles(B, Dp, Hp, Op, op_itemsize, out_dtype.itemsize, vmem_budget)

    Bp = _round_up(B, TB)
    # Pad/cast x only when needed (skip the extra HBM round-trip when aligned).
    if (B, D_in) == (Bp, Dp) and x.dtype == cdtype:
        xp = x
    else:
        xp = jnp.zeros((Bp, Dp), cdtype).at[:B, :D_in].set(x.astype(cdtype))

    grid_b, grid_k = Bp // TB, Hp // TH
    grid = (grid_b, grid_k)

    # Advisory cost so XLA schedules the surrounding (pad/slice) ops sensibly.
    weight_reads = 1 if grid_k == 1 else grid_b   # weights re-streamed per batch tile when H-tiled
    cost = pl.CostEstimate(
        flops=2 * Bp * Hp * (Dp + Op),
        transcendentals=0,
        bytes_accessed=(Bp * Dp * op_itemsize + Bp * Op * out_dtype.itemsize
                        + weight_reads * (Dp * Hp + Hp * Op) * op_itemsize
                        + (Hp + Op) * 4),
    )

    def call(single_buffer_resident):
        def spec(shape, index_map, resident):
            if single_buffer_resident and resident:
                # Constant index map => 1 buffer suffices (halves resident VMEM).
                return pl.BlockSpec(shape, index_map, pipeline_mode=pl.Buffered(1))
            return pl.BlockSpec(shape, index_map)

        in_specs = [
            spec((TB, Dp), lambda i, k: (i, 0), False),   # x: moves with batch tile
            spec((Dp, TH), lambda i, k: (0, k), True),    # W1 hidden chunk
            spec((1, TH), lambda i, k: (0, k), True),     # b1 hidden chunk
            spec((TH, Op), lambda i, k: (k, 0), True),    # W2 hidden chunk
            spec((1, Op), lambda i, k: (0, 0), True),     # b2: constant
        ]
        return pl.pallas_call(
            mlp_kernel,
            out_shape=jax.ShapeDtypeStruct((Bp, Op), out_dtype),
            grid=grid,
            in_specs=in_specs,
            out_specs=pl.BlockSpec((TB, Op), lambda i, k: (i, 0)),
            scratch_shapes=[pltpu.VMEM((TB, Op), jnp.float32)],
            compiler_params=pltpu.CompilerParams(
                dimension_semantics=("parallel", "arbitrary"),
                vmem_limit_bytes=(vmem_cap * 7) // 8,
            ),
            cost_estimate=cost,
        )(xp, w1p, b1p, w2p, b2p)

    if grid_k == 1:
        # Resident weights/biases: constant index maps => try single-buffering.
        try:
            out_padded = call(True)
        except Exception:
            # Fallback for jax builds without pipeline_mode support.
            out_padded = call(False)
    else:
        out_padded = call(False)

    if (Bp, Op) == (B, D_out):
        return out_padded
    return out_padded[:B, :D_out]


def mlp_reference(x, w1, b1, w2, b2):
    h = jnp.maximum(x @ w1 + b1, 0.0)
    return jnp.maximum(h @ w2 + b2, 0.0)


if __name__ == "__main__":
    # Small shapes consistent with the module: MLP(input_dim=32, hidden=64, out=16)
    B, D_in, H, D_out = 8, 32, 64, 16

    key = jax.random.PRNGKey(0)
    kx, k1, k2, k3, k4 = jax.random.split(key, 5)

    x = jax.random.normal(kx, (B, D_in), dtype=jnp.float32)

    # Deterministic init mimicking nn.Linear (uniform +/- 1/sqrt(fan_in)),
    # stored already transposed to (in_features, out_features).
    bound1 = 1.0 / jnp.sqrt(D_in)
    bound2 = 1.0 / jnp.sqrt(H)
    w1 = jax.random.uniform(k1, (D_in, H), minval=-bound1, maxval=bound1, dtype=jnp.float32)
    b1 = jax.random.uniform(k2, (H,), minval=-bound1, maxval=bound1, dtype=jnp.float32)
    w2 = jax.random.uniform(k3, (H, D_out), minval=-bound2, maxval=bound2, dtype=jnp.float32)
    b2 = jax.random.uniform(k4, (D_out,), minval=-bound2, maxval=bound2, dtype=jnp.float32)

    ref = mlp_reference(x, w1, b1, w2, b2)

    # 1) Exact f32 path.
    params_f32 = prepare_mlp_params(w1, b1, w2, b2)               # f32 compute
    out_f32 = jax.block_until_ready(mlp_forward(x, params_f32))
    assert out_f32.shape == (B, D_out)
    assert jnp.allclose(out_f32, ref, atol=1e-5, rtol=1e-5)

    # 2) bf16-operand / f32-accumulate fast path (recommended on v5e/v6e/v7x).
    params_bf16 = prepare_mlp_params(w1, b1, w2, b2, compute_dtype=jnp.bfloat16)
    out_bf16 = jax.block_until_ready(mlp_forward(x, params_bf16))
    assert out_bf16.shape == (B, D_out)
    assert jnp.allclose(out_bf16, ref, atol=3e-2, rtol=3e-2)

    print("KERNEL_OK")
</pallas_src>

<mosaic_0001>
module attributes {stable_mosaic.version = 11 : i64} {
  func.func @mlp_kernel(%arg0: i32, %arg1: i32, %arg2: memref<8x128xf32, #tpu.memory_space<vmem>>, %arg3: memref<128x128xf32, #tpu.memory_space<vmem>>, %arg4: memref<1x128xf32, #tpu.memory_space<vmem>>, %arg5: memref<128x128xf32, #tpu.memory_space<vmem>>, %arg6: memref<1x128xf32, #tpu.memory_space<vmem>>, %arg7: memref<8x128xf32, #tpu.memory_space<vmem>>, %arg8: memref<8x128xf32, #tpu.memory_space<vmem>>) attributes {dimension_semantics = [#tpu.dimension_semantics<parallel>, #tpu.dimension_semantics<arbitrary>], iteration_bounds = array<i64: 1, 1>, scalar_prefetch = 0 : i64, scratch_operands = 1 : i64, tpu.core_type = #tpu.core_type<tc>, window_params = [{transform_indices = @transform_0, window_bounds = array<i64: 8, 128>}, {pipeline_mode = #tpu.pipeline_mode<synchronous>, transform_indices = @transform_1, window_bounds = array<i64: 128, 128>}, {pipeline_mode = #tpu.pipeline_mode<synchronous>, transform_indices = @transform_2, window_bounds = array<i64: 1, 128>}, {pipeline_mode = #tpu.pipeline_mode<synchronous>, transform_indices = @transform_3, window_bounds = array<i64: 128, 128>}, {pipeline_mode = #tpu.pipeline_mode<synchronous>, transform_indices = @transform_4, window_bounds = array<i64: 1, 128>}, {transform_indices = @transform_5, window_bounds = array<i64: 8, 128>}]} {
    %c0_i32 = arith.constant 0 : i32
    %0 = arith.cmpi eq, %arg1, %c0_i32 : i32
    %1 = arith.extui %0 : i1 to i32
    %c0_i32_0 = arith.constant 0 : i32
    %2 = arith.cmpi ne, %1, %c0_i32_0 : i32
    scf.if %2 {
      %cst_16 = arith.constant 0.000000e+00 : f32
      %19 = vector.broadcast %cst_16 : f32 to vector<8x128xf32>
      %c0_17 = arith.constant 0 : index
      %c0_18 = arith.constant 0 : index
      %20 = vector.load %arg8[%c0_17, %c0_18] : memref<8x128xf32, #tpu.memory_space<vmem>>, vector<8x128xf32>
      tpu.vector_store %arg8[%c0_17, %c0_18], %19 {strides = array<i32>} : memref<8x128xf32, #tpu.memory_space<vmem>>, vector<8x128xf32>,
    } else {
    }
    %c0 = arith.constant 0 : index
    %c0_1 = arith.constant 0 : index
    %3 = vector.load %arg2[%c0, %c0_1] : memref<8x128xf32, #tpu.memory_space<vmem>>, vector<8x128xf32>
    %c0_2 = arith.constant 0 : index
    %c0_3 = arith.constant 0 : index
    %4 = vector.load %arg3[%c0_2, %c0_3] : memref<128x128xf32, #tpu.memory_space<vmem>>, vector<128x128xf32>
    %cst = arith.constant dense<0.000000e+00> : vector<8x128xf32>
    %5 = tpu.matmul %3, %4, %cst {dimension_numbers = #tpu.dot_dimension_numbers<[1], [0], [0], [1], [0, 0, 1, 1], [], []>} : vector<8x128xf32>, vector<128x128xf32>, vector<8x128xf32> -> vector<8x128xf32>
    %c0_4 = arith.constant 0 : index
    %c0_5 = arith.constant 0 : index
    %6 = vector.load %arg4[%c0_4, %c0_5] : memref<1x128xf32, #tpu.memory_space<vmem>>, vector<1x128xf32>
    %7 = vector.broadcast %6 : vector<1x128xf32> to vector<8x128xf32>
    %8 = arith.addf %5, %7 : vector<8x128xf32>
    %cst_6 = arith.constant 0.000000e+00 : f32
    %9 = vector.broadcast %cst_6 : f32 to vector<8x128xf32>
    %10 = arith.maximumf %8, %9 : vector<8x128xf32>
    %c0_7 = arith.constant 0 : index
    %c0_8 = arith.constant 0 : index
    %11 = vector.load %arg8[%c0_7, %c0_8] : memref<8x128xf32, #tpu.memory_space<vmem>>, vector<8x128xf32>
    %c0_9 = arith.constant 0 : index
    %c0_10 = arith.constant 0 : index
    %12 = vector.load %arg5[%c0_9, %c0_10] : memref<128x128xf32, #tpu.memory_space<vmem>>, vector<128x128xf32>
    %cst_11 = arith.constant dense<0.000000e+00> : vector<8x128xf32>
    %13 = tpu.matmul %10, %12, %cst_11 {dimension_numbers = #tpu.dot_dimension_numbers<[1], [0], [0], [1], [0, 0, 1, 1], [], []>} : vector<8x128xf32>, vector<128x128xf32>, vector<8x128xf32> -> vector<8x128xf32>
    %14 = arith.addf %11, %13 : vector<8x128xf32>
    %c0_12 = arith.constant 0 : index
    %c0_13 = arith.constant 0 : index
    %15 = vector.load %arg8[%c0_12, %c0_13] : memref<8x128xf32, #tpu.memory_space<vmem>>, vector<8x128xf32>
    tpu.vector_store %arg8[%c0_12, %c0_13], %14 {strides = array<i32>} : memref<8x128xf32, #tpu.memory_space<vmem>>, vector<8x128xf32>,
    %c0_i32_14 = arith.constant 0 : i32
    %16 = arith.cmpi eq, %arg1, %c0_i32_14 : i32
    %17 = arith.extui %16 : i1 to i32
    %c0_i32_15 = arith.constant 0 : i32
    %18 = arith.cmpi ne, %17, %c0_i32_15 : i32
    scf.if %18 {
      %c0_16 = arith.constant 0 : index
      %c0_17 = arith.constant 0 : index
      %19 = vector.load %arg8[%c0_16, %c0_17] : memref<8x128xf32, #tpu.memory_space<vmem>>, vector<8x128xf32>
      %c0_18 = arith.constant 0 : index
      %c0_19 = arith.constant 0 : index
      %20 = vector.load %arg6[%c0_18, %c0_19] : memref<1x128xf32, #tpu.memory_space<vmem>>, vector<1x128xf32>
      %21 = vector.broadcast %20 : vector<1x128xf32> to vector<8x128xf32>
      %22 = arith.addf %19, %21 : vector<8x128xf32>
      %cst_20 = arith.constant 0.000000e+00 : f32
      %23 = vector.broadcast %cst_20 : f32 to vector<8x128xf32>
      %24 = arith.maximumf %22, %23 : vector<8x128xf32>
      %c0_21 = arith.constant 0 : index
      %c0_22 = arith.constant 0 : index
      %25 = vector.load %arg7[%c0_21, %c0_22] : memref<8x128xf32, #tpu.memory_space<vmem>>, vector<8x128xf32>
      tpu.vector_store %arg7[%c0_21, %c0_22], %24 {strides = array<i32>} : memref<8x128xf32, #tpu.memory_space<vmem>>, vector<8x128xf32>,
    } else {
    }
    return
  }
  func.func @transform_0(%arg0: i32, %arg1: i32) -> (i32, i32) {
    %c0_i32 = arith.constant 0 : i32
    %c0_i32_0 = arith.constant 0 : i32
    return %arg0, %c0_i32 : i32, i32
  }
  func.func @transform_1(%arg0: i32, %arg1: i32) -> (i32, i32) {
    %c0_i32 = arith.constant 0 : i32
    %c0_i32_0 = arith.constant 0 : i32
    return %c0_i32, %arg1 : i32, i32
  }
  func.func @transform_2(%arg0: i32, %arg1: i32) -> (i32, i32) {
    %c0_i32 = arith.constant 0 : i32
    %c0_i32_0 = arith.constant 0 : i32
    return %c0_i32, %arg1 : i32, i32
  }
  func.func @transform_3(%arg0: i32, %arg1: i32) -> (i32, i32) {
    %c0_i32 = arith.constant 0 : i32
    %c0_i32_0 = arith.constant 0 : i32
    return %arg1, %c0_i32 : i32, i32
  }
  func.func @transform_4(%arg0: i32, %arg1: i32) -> (i32, i32) {
    %c0_i32 = arith.constant 0 : i32
    %c0_i32_0 = arith.constant 0 : i32
    %c0_i32_1 = arith.constant 0 : i32
    return %c0_i32, %c0_i32_0 : i32, i32
  }
  func.func @transform_5(%arg0: i32, %arg1: i32) -> (i32, i32) {
    %c0_i32 = arith.constant 0 : i32
    %c0_i32_0 = arith.constant 0 : i32
    return %arg0, %c0_i32 : i32, i32
  }
}

module attributes {stable_mosaic.version = 11 : i64} {
  func.func @mlp_kernel(%arg0: i32, %arg1: i32, %arg2: memref<8x128xf32, #tpu.memory_space<vmem>>, %arg3: memref<128x128xf32, #tpu.memory_space<vmem>>, %arg4: memref<1x128xf32, #tpu.memory_space<vmem>>, %arg5: memref<128x128xf32, #tpu.memory_space<vmem>>, %arg6: memref<1x128xf32, #tpu.memory_space<vmem>>, %arg7: memref<8x128xf32, #tpu.memory_space<vmem>>, %arg8: memref<8x128xf32, #tpu.memory_space<vmem>>) attributes {dimension_semantics = [#tpu.dimension_semantics<parallel>, #tpu.dimension_semantics<arbitrary>], iteration_bounds = array<i64: 1, 1>, scalar_prefetch = 0 : i64, scratch_operands = 1 : i64, tpu.core_type = #tpu.core_type<tc>, window_params = [{transform_indices = @transform_0, window_bounds = array<i64: 8, 128>}, {transform_indices = @transform_1, window_bounds = array<i64: 128, 128>}, {transform_indices = @transform_2, window_bounds = array<i64: 1, 128>}, {transform_indices = @transform_3, window_bounds = array<i64: 128, 128>}, {pipeline_mode = #tpu.pipeline_mode<synchronous>, transform_indices = @transform_4, window_bounds = array<i64: 1, 128>}, {transform_indices = @transform_5, window_bounds = array<i64: 8, 128>}]} {
    %c0_i32 = arith.constant 0 : i32
    %0 = arith.cmpi eq, %arg1, %c0_i32 : i32
    %1 = arith.extui %0 : i1 to i32
    %c0_i32_0 = arith.constant 0 : i32
    %2 = arith.cmpi ne, %1, %c0_i32_0 : i32
    scf.if %2 {
      %cst_16 = arith.constant 0.000000e+00 : f32
      %19 = vector.broadcast %cst_16 : f32 to vector<8x128xf32>
      %c0_17 = arith.constant 0 : index
      %c0_18 = arith.constant 0 : index
      %20 = vector.load %arg8[%c0_17, %c0_18] : memref<8x128xf32, #tpu.memory_space<vmem>>, vector<8x128xf32>
      tpu.vector_store %arg8[%c0_17, %c0_18], %19 {strides = array<i32>} : memref<8x128xf32, #tpu.memory_space<vmem>>, vector<8x128xf32>,
    } else {
    }
    %c0 = arith.constant 0 : index
    %c0_1 = arith.constant 0 : index
    %3 = vector.load %arg2[%c0, %c0_1] : memref<8x128xf32, #tpu.memory_space<vmem>>, vector<8x128xf32>
    %c0_2 = arith.constant 0 : index
    %c0_3 = arith.constant 0 : index
    %4 = vector.load %arg3[%c0_2, %c0_3] : memref<128x128xf32, #tpu.memory_space<vmem>>, vector<128x128xf32>
    %cst = arith.constant dense<0.000000e+00> : vector<8x128xf32>
    %5 = tpu.matmul %3, %4, %cst {dimension_numbers = #tpu.dot_dimension_numbers<[1], [0], [0], [1], [0, 0, 1, 1], [], []>} : vector<8x128xf32>, vector<128x128xf32>, vector<8x128xf32> -> vector<8x128xf32>
    %c0_4 = arith.constant 0 : index
    %c0_5 = arith.constant 0 : index
    %6 = vector.load %arg4[%c0_4, %c0_5] : memref<1x128xf32, #tpu.memory_space<vmem>>, vector<1x128xf32>
    %7 = vector.broadcast %6 : vector<1x128xf32> to vector<8x128xf32>
    %8 = arith.addf %5, %7 : vector<8x128xf32>
    %cst_6 = arith.constant 0.000000e+00 : f32
    %9 = vector.broadcast %cst_6 : f32 to vector<8x128xf32>
    %10 = arith.maximumf %8, %9 : vector<8x128xf32>
    %c0_7 = arith.constant 0 : index
    %c0_8 = arith.constant 0 : index
    %11 = vector.load %arg8[%c0_7, %c0_8] : memref<8x128xf32, #tpu.memory_space<vmem>>, vector<8x128xf32>
    %c0_9 = arith.constant 0 : index
    %c0_10 = arith.constant 0 : index
    %12 = vector.load %arg5[%c0_9, %c0_10] : memref<128x128xf32, #tpu.memory_space<vmem>>, vector<128x128xf32>
    %cst_11 = arith.constant dense<0.000000e+00> : vector<8x128xf32>
    %13 = tpu.matmul %10, %12, %cst_11 {dimension_numbers = #tpu.dot_dimension_numbers<[1], [0], [0], [1], [0, 0, 1, 1], [], []>} : vector<8x128xf32>, vector<128x128xf32>, vector<8x128xf32> -> vector<8x128xf32>
    %14 = arith.addf %11, %13 : vector<8x128xf32>
    %c0_12 = arith.constant 0 : index
    %c0_13 = arith.constant 0 : index
    %15 = vector.load %arg8[%c0_12, %c0_13] : memref<8x128xf32, #tpu.memory_space<vmem>>, vector<8x128xf32>
    tpu.vector_store %arg8[%c0_12, %c0_13], %14 {strides = array<i32>} : memref<8x128xf32, #tpu.memory_space<vmem>>, vector<8x128xf32>,
    %c0_i32_14 = arith.constant 0 : i32
    %16 = arith.cmpi eq, %arg1, %c0_i32_14 : i32
    %17 = arith.extui %16 : i1 to i32
    %c0_i32_15 = arith.constant 0 : i32
    %18 = arith.cmpi ne, %17, %c0_i32_15 : i32
    scf.if %18 {
      %c0_16 = arith.constant 0 : index
      %c0_17 = arith.constant 0 : index
      %19 = vector.load %arg8[%c0_16, %c0_17] : memref<8x128xf32, #tpu.memory_space<vmem>>, vector<8x128xf32>
      %c0_18 = arith.constant 0 : index
      %c0_19 = arith.constant 0 : index
      %20 = vector.load %arg6[%c0_18, %c0_19] : memref<1x128xf32, #tpu.memory_space<vmem>>, vector<1x128xf32>
      %21 = vector.broadcast %20 : vector<1x128xf32> to vector<8x128xf32>
      %22 = arith.addf %19, %21 : vector<8x128xf32>
      %cst_20 = arith.constant 0.000000e+00 : f32
      %23 = vector.broadcast %cst_20 : f32 to vector<8x128xf32>
      %24 = arith.maximumf %22, %23 : vector<8x128xf32>
      %c0_21 = arith.constant 0 : index
      %c0_22 = arith.constant 0 : index
      %25 = vector.load %arg7[%c0_21, %c0_22] : memref<8x128xf32, #tpu.memory_space<vmem>>, vector<8x128xf32>
      tpu.vector_store %arg7[%c0_21, %c0_22], %24 {strides = array<i32>} : memref<8x128xf32, #tpu.memory_space<vmem>>, vector<8x128xf32>,
    } else {
    }
    return
  }
  func.func @transform_0(%arg0: i32, %arg1: i32) -> (i32, i32) {
    %c0_i32 = arith.constant 0 : i32
    %c0_i32_0 = arith.constant 0 : i32
    return %arg0, %c0_i32 : i32, i32
  }
  func.func @transform_1(%arg0: i32, %arg1: i32) -> (i32, i32) {
    %c0_i32 = arith.constant 0 : i32
    %c0_i32_0 = arith.constant 0 : i32
    return %c0_i32, %arg1 : i32, i32
  }
  func.func @transform_2(%arg0: i32, %arg1: i32) -> (i32, i32) {
    %c0_i32 = arith.constant 0 : i32
    %c0_i32_0 = arith.constant 0 : i32
    return %c0_i32, %arg1 : i32, i32
  }
  func.func @transform_3(%arg0: i32, %arg1: i32) -> (i32, i32) {
    %c0_i32 = arith.constant 0 : i32
    %c0_i32_0 = arith.constant 0 : i32
    return %arg1, %c0_i32 : i32, i32
  }
  func.func @transform_4(%arg0: i32, %arg1: i32) -> (i32, i32) {
    %c0_i32 = arith.constant 0 : i32
    %c0_i32_0 = arith.constant 0 : i32
    %c0_i32_1 = arith.constant 0 : i32
    return %c0_i32, %c0_i32_0 : i32, i32
  }
  func.func @transform_5(%arg0: i32, %arg1: i32) -> (i32, i32) {
    %c0_i32 = arith.constant 0 : i32
    %c0_i32_0 = arith.constant 0 : i32
    return %arg0, %c0_i32 : i32, i32
  }
}

</mosaic_0001>

<llo_original>
// kernel: tpu_custom_call.1
$region0: #{tpu_custom_call.1}
  #allocation0 [shape = 'u32[]', space=smem, size = 0x4, offset = 0x4, fixed_abs, tag = 'smem constant byte address 0x4 - core index']
  #allocation1 [shape = 'u32[72,128]{1,0:T(1,128)}', space=vmem, size = 0x9000, scoped, tag = 'internal scratch']
  #allocation2 [shape = 'f32[8,128]{1,0:T(8,128)}', space=vmem, size = 0x1000, scoped, tag = 'scratch operand']
  %s0 = inlined_call_operand.hbm [shape: f32[8,128], index: 0, kind: input, shape index: {}]
  %s1 = inlined_call_operand.hbm [shape: f32[128,128], index: 1, kind: input, shape index: {}]
  %s2 = inlined_call_operand.vmem [shape: f32[1,128], index: 2, kind: input, shape index: {}]
  %s3 = inlined_call_operand.hbm [shape: f32[128,128], index: 3, kind: input, shape index: {}]
  %s4 = inlined_call_operand.vmem [shape: f32[1,128], index: 4, kind: input, shape index: {}]
  %s5 = inlined_call_operand.hbm [shape: f32[8,128], index: 5, kind: output, shape index: {}]
  %s6 = sld [smem:[#allocation0]]
  $region50: #{tpu_custom_call.1} parent=0
    _
  %s8 = ssub.s32 1, %s6
  %s9 = scalar_select 0, %s8, %s6
  $region1: #{tpu_custom_call.1} parent=0
    #allocation3 [shape = 'u8[4096]{0}', space=vmem, size = 0x1000, scoped, tag = 'input window, operand 0, single buffered']
    #allocation4 [shape = 's32[1]{0}', space=sflag, size = 0x4, scoped, tag = 'scoped memory for tpu_custom_call.1']
    #allocation5 [shape = 's32[1]{0}', space=sflag, size = 0x4, scoped, tag = 'scoped memory for tpu_custom_call.1']
    #allocation6 [shape = 'u8[65536]{0}', space=vmem, size = 0x10000, scoped, tag = 'input window, operand 1, single buffered']
    #allocation7 [shape = 's32[1]{0}', space=sflag, size = 0x4, scoped, tag = 'scoped memory for tpu_custom_call.1']
    #allocation8 [shape = 'u8[65536]{0}', space=vmem, size = 0x10000, scoped, tag = 'input window, operand 3, single buffered']
    #allocation9 [shape = 'u8[4096]{0}', space=vmem, size = 0x1000, scoped, tag = 'output window, operand 0, single buffered']
    %10 = vsyncpa [#allocation4], 0
    %11 = vsyncpa [#allocation7], 0
    %12 = vsyncpa [#allocation5], 0
    // Predicated region
    $region2: #{tpu_custom_call.1} parent=1 // pred_check
      _
    $region3: #{tpu_custom_call.1} parent=1 // pred_check_branch
      %14 = sbr.rel (0) target = $region5
    $region4: #{tpu_custom_call.1} parent=1 // pred_region
      %16 = vsyncadd [#allocation4], 0
      %s18 = sshll.u32 %s0, 4
      %s19 = int_to_ptr.hbm [resolvable:$true] %s18
      %s20 = sshll.u32 [#allocation3], 4
      %s21 = int_to_ptr.vmem [resolvable:$true] %s20
      %23 = dma.hbm_to_vmem [thread:$0]  %s19, 128, %s21, [#allocation4]
    $region5: #{tpu_custom_call.1} parent=1 // pred_fallthru
      _
    // Predicated region
    $region6: #{tpu_custom_call.1} parent=1 // pred_check
      _
    $region7: #{tpu_custom_call.1} parent=1 // pred_check_branch
      %25 = sbr.rel (0) target = $region9
    $region8: #{tpu_custom_call.1} parent=1 // pred_region
      %27 = vsyncadd [#allocation7], 0
      %s28 = sshll.u32 %s1, 4
      %s29 = int_to_ptr.hbm [resolvable:$true] %s28
      %s30 = sshll.u32 [#allocation6], 4
      %s31 = int_to_ptr.vmem [resolvable:$true] %s30
      %36 = dma.hbm_to_vmem [thread:$0]  %s29, 2048, %s31, [#allocation7], 128, 128, 8
    $region9: #{tpu_custom_call.1} parent=1 // pred_fallthru
      _
    // Predicated region
    $region10: #{tpu_custom_call.1} parent=1 // pred_check
      _
    $region11: #{tpu_custom_call.1} parent=1 // pred_check_branch
      %38 = sbr.rel (0) target = $region13
    $region12: #{tpu_custom_call.1} parent=1 // pred_region
      _
    $region13: #{tpu_custom_call.1} parent=1 // pred_fallthru
      _
    // Predicated region
    $region14: #{tpu_custom_call.1} parent=1 // pred_check
      _
    $region15: #{tpu_custom_call.1} parent=1 // pred_check_branch
      %40 = sbr.rel (0) target = $region17
    $region16: #{tpu_custom_call.1} parent=1 // pred_region
      %42 = vsyncadd [#allocation7], 0
      %s43 = sshll.u32 %s3, 4
      %s44 = int_to_ptr.hbm [resolvable:$true] %s43
      %s45 = sshll.u32 [#allocation8], 4
      %s46 = int_to_ptr.vmem [resolvable:$true] %s45
      %51 = dma.hbm_to_vmem [thread:$0]  %s44, 2048, %s46, [#allocation7], 128, 128, 8
    $region17: #{tpu_custom_call.1} parent=1 // pred_fallthru
      _
    // Predicated region
    $region18: #{tpu_custom_call.1} parent=1 // pred_check
      _
    $region19: #{tpu_custom_call.1} parent=1 // pred_check_branch
      %53 = sbr.rel (0) target = $region21
    $region20: #{tpu_custom_call.1} parent=1 // pred_region
      _
    $region21: #{tpu_custom_call.1} parent=1 // pred_fallthru
      _
    // Predicated region
    $region22: #{tpu_custom_call.1} parent=1 // pred_check
      _
    $region23: #{tpu_custom_call.1} parent=1 // pred_check_branch
      %55 = sbr.rel (0) target = $region25
    $region24: #{tpu_custom_call.1} parent=1 // pred_region
      %57 = dma.done [#allocation4], 128
    $region25: #{tpu_custom_call.1} parent=1 // pred_fallthru
      _
    // Predicated region
    $region26: #{tpu_custom_call.1} parent=1 // pred_check
      _
    $region27: #{tpu_custom_call.1} parent=1 // pred_check_branch
      %59 = sbr.rel (0) target = $region29
    $region28: #{tpu_custom_call.1} parent=1 // pred_region
      %61 = dma.done [#allocation7], 2048
    $region29: #{tpu_custom_call.1} parent=1 // pred_fallthru
      _
    // Predicated region
    $region30: #{tpu_custom_call.1} parent=1 // pred_check
      _
    $region31: #{tpu_custom_call.1} parent=1 // pred_check_branch
      %63 = sbr.rel (0) target = $region33
    $region32: #{tpu_custom_call.1} parent=1 // pred_region
      %65 = dma.done [#allocation7], 2048
    $region33: #{tpu_custom_call.1} parent=1 // pred_fallthru
      _
    %p66 = scmp.eq.s32.totalorder 0, 0
    // Predicated region
    $region34: #{tpu_custom_call.1} parent=1 // pred_check
      %p67 = pneg %p66
    $region35: #{tpu_custom_call.1} parent=1 // pred_check_branch
      %69 = sbr.rel (%p67) target = $region37
    $region36: #{tpu_custom_call.1} parent=1 // pred_region
      %70 = vst [vmem:[#allocation2] sm:$0xff] 0.0
    $region37: #{tpu_custom_call.1} parent=1 // pred_fallthru
      _
    %v71 = vld [vmem:[#allocation3] sm:$0xff]
    %v72 = vld [vmem:[#allocation6] sm:$0xff]
    %v73 = vld [vmem:[#allocation6 + $0x8] sm:$0xff]
    %v74 = vld [vmem:[#allocation6 + $0x10] sm:$0xff]
    %v75 = vld [vmem:[#allocation6 + $0x18] sm:$0xff]
    %v76 = vld [vmem:[#allocation6 + $0x20] sm:$0xff]
    %v77 = vld [vmem:[#allocation6 + $0x28] sm:$0xff]
    %v78 = vld [vmem:[#allocation6 + $0x30] sm:$0xff]
    %v79 = vld [vmem:[#allocation6 + $0x38] sm:$0xff]
    %v80 = vld [vmem:[#allocation6 + $0x40] sm:$0xff]
    %v81 = vld [vmem:[#allocation6 + $0x48] sm:$0xff]
    %v82 = vld [vmem:[#allocation6 + $0x50] sm:$0xff]
    %v83 = vld [vmem:[#allocation6 + $0x58] sm:$0xff]
    %v84 = vld [vmem:[#allocation6 + $0x60] sm:$0xff]
    %v85 = vld [vmem:[#allocation6 + $0x68] sm:$0xff]
    %v86 = vld [vmem:[#allocation6 + $0x70] sm:$0xff]
    %v87 = vld [vmem:[#allocation6 + $0x78] sm:$0xff]
    %v88 = vld [vmem:[%s2] sm:$0x1]
    %v90 = vperm.slane %v88, 0
    %92 = vmatpush.msra.mxu0 %v87
    %93 = vmatpush.msra.mxu0 %v86
    %94 = vmatpush.msra.mxu0 %v85
    %95 = vmatpush.msra.mxu0 %v84
    %96 = vmatpush.msra.mxu0 %v83
    %97 = vmatpush.msra.mxu0 %v82
    %98 = vmatpush.msra.mxu0 %v81
    %99 = vmatpush.msra.mxu0 %v80
    %100 = vmatpush.msra.mxu0 %v79
    %101 = vmatpush.msra.mxu0 %v78
    %102 = vmatpush.msra.mxu0 %v77
    %103 = vmatpush.msra.mxu0 %v76
    %104 = vmatpush.msra.mxu0 %v75
    %105 = vmatpush.msra.mxu0 %v74
    %106 = vmatpush.msra.mxu0 %v73
    %107 = vmatpush.msra.mxu0 %v72
    %108 = vmatmul.f32.gmra.mxu0 %v71
    %v109 = vpop.f32.mrf.mxu0
    %v110 = vadd.f32 %v90, %v109
    %111 = vdwg.mxu0
    %v112 = vmax.f32 %v110, 0.0
    %v113 = vld [vmem:[#allocation2] sm:$0xff]
    %v114 = vld [vmem:[#allocation8] sm:$0xff]
    %v115 = vld [vmem:[#allocation8 + $0x8] sm:$0xff]
    %v116 = vld [vmem:[#allocation8 + $0x10] sm:$0xff]
    %v117 = vld [vmem:[#allocation8 + $0x18] sm:$0xff]
    %v118 = vld [vmem:[#allocation8 + $0x20] sm:$0xff]
    %v119 = vld [vmem:[#allocation8 + $0x28] sm:$0xff]
    %v120 = vld [vmem:[#allocation8 + $0x30] sm:$0xff]
    %v121 = vld [vmem:[#allocation8 + $0x38] sm:$0xff]
    %v122 = vld [vmem:[#allocation8 + $0x40] sm:$0xff]
    %v123 = vld [vmem:[#allocation8 + $0x48] sm:$0xff]
    %v124 = vld [vmem:[#allocation8 + $0x50] sm:$0xff]
    %v125 = vld [vmem:[#allocation8 + $0x58] sm:$0xff]
    %v126 = vld [vmem:[#allocation8 + $0x60] sm:$0xff]
    %v127 = vld [vmem:[#allocation8 + $0x68] sm:$0xff]
    %v128 = vld [vmem:[#allocation8 + $0x70] sm:$0xff]
    %v129 = vld [vmem:[#allocation8 + $0x78] sm:$0xff]
    %130 = vmatpush.msra.mxu0 %v129
    %131 = vmatpush.msra.mxu0 %v128
    %132 = vmatpush.msra.mxu0 %v127
    %133 = vmatpush.msra.mxu0 %v126
    %134 = vmatpush.msra.mxu0 %v125
    %135 = vmatpush.msra.mxu0 %v124
    %136 = vmatpush.msra.mxu0 %v123
    %137 = vmatpush.msra.mxu0 %v122
    %138 = vmatpush.msra.mxu0 %v121
    %139 = vmatpush.msra.mxu0 %v120
    %140 = vmatpush.msra.mxu0 %v119
    %141 = vmatpush.msra.mxu0 %v118
    %142 = vmatpush.msra.mxu0 %v117
    %143 = vmatpush.msra.mxu0 %v116
    %144 = vmatpush.msra.mxu0 %v115
    %145 = vmatpush.msra.mxu0 %v114
    %146 = vmatmul.f32.gmra.mxu0 %v112
    %v147 = vpop.f32.mrf.mxu0
    %v148 = vadd.f32 0.0, %v147
    %149 = vdwg.mxu0
    %v150 = vadd.f32 %v113, %v148
    %151 = vst [vmem:[#allocation2] sm:$0xff] %v150
    // Predicated region
    $region38: #{tpu_custom_call.1} parent=1 // pred_check
      %p152 = pneg %p66
    $region39: #{tpu_custom_call.1} parent=1 // pred_check_branch
      %154 = sbr.rel (%p152) target = $region41
    $region40: #{tpu_custom_call.1} parent=1 // pred_region
      %v155 = vld [vmem:[#allocation2] sm:$0xff]
      %v156 = vld [vmem:[%s4] sm:$0x1]
      %v158 = vperm.slane %v156, 0
      %v160 = vadd.f32 %v155, %v158
      %v161 = vmax.f32 %v160, 0.0
      %162 = vst [vmem:[#allocation9] sm:$0xff] %v161
    $region41: #{tpu_custom_call.1} parent=1 // pred_fallthru
      _
    // Predicated region
    $region42: #{tpu_custom_call.1} parent=1 // pred_check
      _
    $region43: #{tpu_custom_call.1} parent=1 // pred_check_branch
      %164 = sbr.rel (0) target = $region45
    $region44: #{tpu_custom_call.1} parent=1 // pred_region
      %166 = vsyncadd [#allocation5], 0
      %s168 = sshll.u32 [#allocation9], 4
      %s169 = int_to_ptr.vmem [resolvable:$true] %s168
      %s170 = sshll.u32 %s5, 4
      %s171 = int_to_ptr.hbm [resolvable:$true] %s170
      %173 = dma.vmem_to_hbm [thread:$0]  %s169, 128, %s171, [#allocation5]
    $region45: #{tpu_custom_call.1} parent=1 // pred_fallthru
      _
    // Predicated region
    $region46: #{tpu_custom_call.1} parent=1 // pred_check
      _
    $region47: #{tpu_custom_call.1} parent=1 // pred_check_branch
      %175 = sbr.rel (0) target = $region49
    $region48: #{tpu_custom_call.1} parent=1 // pred_region
      %177 = dma.done [#allocation5], 128
    $region49: #{tpu_custom_call.1} parent=1 // pred_fallthru
      _
    %178 = vsyncpa [#allocation4], 1
    %179 = vsyncpa [#allocation7], 1
    %180 = vsyncpa [#allocation5], 1

// kernel: tpu_custom_call.1
$region0: #{tpu_custom_call.1}
  #allocation0 [shape = 'u32[]', space=smem, size = 0x4, offset = 0x4, fixed_abs, tag = 'smem constant byte address 0x4 - core index']
  #allocation1 [shape = 'u32[72,128]{1,0:T(1,128)}', space=vmem, size = 0x9000, scoped, tag = 'internal scratch']
  #allocation2 [shape = 'f32[8,128]{1,0:T(8,128)}', space=vmem, size = 0x1000, scoped, tag = 'scratch operand']
  %s0 = inlined_call_operand.hbm [shape: f32[8,128], index: 0, kind: input, shape index: {}]
  %s1 = inlined_call_operand.hbm [shape: f32[128,128], index: 1, kind: input, shape index: {}]
  %s2 = inlined_call_operand.vmem [shape: f32[1,128], index: 2, kind: input, shape index: {}]
  %s3 = inlined_call_operand.hbm [shape: f32[128,128], index: 3, kind: input, shape index: {}]
  %s4 = inlined_call_operand.vmem [shape: f32[1,128], index: 4, kind: input, shape index: {}]
  %s5 = inlined_call_operand.hbm [shape: f32[8,128], index: 5, kind: output, shape index: {}]
  %s6 = sld [smem:[#allocation0]]
  $region50: #{tpu_custom_call.1} parent=0
    _
  %s8 = ssub.s32 1, %s6
  %s9 = scalar_select 0, %s8, %s6
  $region1: #{tpu_custom_call.1} parent=0
    #allocation3 [shape = 'u8[4096]{0}', space=vmem, size = 0x1000, scoped, tag = 'input window, operand 0, single buffered']
    #allocation4 [shape = 's32[1]{0}', space=sflag, size = 0x4, scoped, tag = 'scoped memory for tpu_custom_call.1']
    #allocation5 [shape = 's32[1]{0}', space=sflag, size = 0x4, scoped, tag = 'scoped memory for tpu_custom_call.1']
    #allocation6 [shape = 'u8[65536]{0}', space=vmem, size = 0x10000, scoped, tag = 'input window, operand 1, single buffered']
    #allocation7 [shape = 's32[1]{0}', space=sflag, size = 0x4, scoped, tag = 'scoped memory for tpu_custom_call.1']
    #allocation8 [shape = 'u8[65536]{0}', space=vmem, size = 0x10000, scoped, tag = 'input window, operand 3, single buffered']
    #allocation9 [shape = 'u8[4096]{0}', space=vmem, size = 0x1000, scoped, tag = 'output window, operand 0, single buffered']
    %10 = vsyncpa [#allocation4], 0
    %11 = vsyncpa [#allocation7], 0
    %12 = vsyncpa [#allocation5], 0
    // Predicated region
    $region2: #{tpu_custom_call.1} parent=1 // pred_check
      _
    $region3: #{tpu_custom_call.1} parent=1 // pred_check_branch
      %14 = sbr.rel (0) target = $region5
    $region4: #{tpu_custom_call.1} parent=1 // pred_region
      %16 = vsyncadd [#allocation4], 0
      %s18 = sshll.u32 %s0, 4
      %s19 = int_to_ptr.hbm [resolvable:$true] %s18
      %s20 = sshll.u32 [#allocation3], 4
      %s21 = int_to_ptr.vmem [resolvable:$true] %s20
      %23 = dma.hbm_to_vmem [thread:$0]  %s19, 128, %s21, [#allocation4]
    $region5: #{tpu_custom_call.1} parent=1 // pred_fallthru
      _
    // Predicated region
    $region6: #{tpu_custom_call.1} parent=1 // pred_check
      _
    $region7: #{tpu_custom_call.1} parent=1 // pred_check_branch
      %25 = sbr.rel (0) target = $region9
    $region8: #{tpu_custom_call.1} parent=1 // pred_region
      %27 = vsyncadd [#allocation7], 0
      %s28 = sshll.u32 %s1, 4
      %s29 = int_to_ptr.hbm [resolvable:$true] %s28
      %s30 = sshll.u32 [#allocation6], 4
      %s31 = int_to_ptr.vmem [resolvable:$true] %s30
      %36 = dma.hbm_to_vmem [thread:$0]  %s29, 2048, %s31, [#allocation7], 128, 128, 8
    $region9: #{tpu_custom_call.1} parent=1 // pred_fallthru
      _
    // Predicated region
    $region10: #{tpu_custom_call.1} parent=1 // pred_check
      _
    $region11: #{tpu_custom_call.1} parent=1 // pred_check_branch
      %38 = sbr.rel (0) target = $region13
    $region12: #{tpu_custom_call.1} parent=1 // pred_region
      _
    $region13: #{tpu_custom_call.1} parent=1 // pred_fallthru
      _
    // Predicated region
    $region14: #{tpu_custom_call.1} parent=1 // pred_check
      _
    $region15: #{tpu_custom_call.1} parent=1 // pred_check_branch
      %40 = sbr.rel (0) target = $region17
    $region16: #{tpu_custom_call.1} parent=1 // pred_region
      %42 = vsyncadd [#allocation7], 0
      %s43 = sshll.u32 %s3, 4
      %s44 = int_to_ptr.hbm [resolvable:$true] %s43
      %s45 = sshll.u32 [#allocation8], 4
      %s46 = int_to_ptr.vmem [resolvable:$true] %s45
      %51 = dma.hbm_to_vmem [thread:$0]  %s44, 2048, %s46, [#allocation7], 128, 128, 8
    $region17: #{tpu_custom_call.1} parent=1 // pred_fallthru
      _
    // Predicated region
    $region18: #{tpu_custom_call.1} parent=1 // pred_check
      _
    $region19: #{tpu_custom_call.1} parent=1 // pred_check_branch
      %53 = sbr.rel (0) target = $region21
    $region20: #{tpu_custom_call.1} parent=1 // pred_region
      _
    $region21: #{tpu_custom_call.1} parent=1 // pred_fallthru
      _
    // Predicated region
    $region22: #{tpu_custom_call.1} parent=1 // pred_check
      _
    $region23: #{tpu_custom_call.1} parent=1 // pred_check_branch
      %55 = sbr.rel (0) target = $region25
    $region24: #{tpu_custom_call.1} parent=1 // pred_region
      %57 = dma.done [#allocation4], 128
    $region25: #{tpu_custom_call.1} parent=1 // pred_fallthru
      _
    // Predicated region
    $region26: #{tpu_custom_call.1} parent=1 // pred_check
      _
    $region27: #{tpu_custom_call.1} parent=1 // pred_check_branch
      %59 = sbr.rel (0) target = $region29
    $region28: #{tpu_custom_call.1} parent=1 // pred_region
      %61 = dma.done [#allocation7], 2048
    $region29: #{tpu_custom_call.1} parent=1 // pred_fallthru
      _
    // Predicated region
    $region30: #{tpu_custom_call.1} parent=1 // pred_check
      _
    $region31: #{tpu_custom_call.1} parent=1 // pred_check_branch
      %63 = sbr.rel (0) target = $region33
    $region32: #{tpu_custom_call.1} parent=1 // pred_region
      %65 = dma.done [#allocation7], 2048
    $region33: #{tpu_custom_call.1} parent=1 // pred_fallthru
      _
    %p66 = scmp.eq.s32.totalorder 0, 0
    // Predicated region
    $region34: #{tpu_custom_call.1} parent=1 // pred_check
      %p67 = pneg %p66
    $region35: #{tpu_custom_call.1} parent=1 // pred_check_branch
      %69 = sbr.rel (%p67) target = $region37
    $region36: #{tpu_custom_call.1} parent=1 // pred_region
      %70 = vst [vmem:[#allocation2] sm:$0xff] 0.0
    $region37: #{tpu_custom_call.1} parent=1 // pred_fallthru
      _
    %v71 = vld [vmem:[#allocation3] sm:$0xff]
    %v72 = vld [vmem:[#allocation6] sm:$0xff]
    %v73 = vld [vmem:[#allocation6 + $0x8] sm:$0xff]
    %v74 = vld [vmem:[#allocation6 + $0x10] sm:$0xff]
    %v75 = vld [vmem:[#allocation6 + $0x18] sm:$0xff]
    %v76 = vld [vmem:[#allocation6 + $0x20] sm:$0xff]
    %v77 = vld [vmem:[#allocation6 + $0x28] sm:$0xff]
    %v78 = vld [vmem:[#allocation6 + $0x30] sm:$0xff]
    %v79 = vld [vmem:[#allocation6 + $0x38] sm:$0xff]
    %v80 = vld [vmem:[#allocation6 + $0x40] sm:$0xff]
    %v81 = vld [vmem:[#allocation6 + $0x48] sm:$0xff]
    %v82 = vld [vmem:[#allocation6 + $0x50] sm:$0xff]
    %v83 = vld [vmem:[#allocation6 + $0x58] sm:$0xff]
    %v84 = vld [vmem:[#allocation6 + $0x60] sm:$0xff]
    %v85 = vld [vmem:[#allocation6 + $0x68] sm:$0xff]
    %v86 = vld [vmem:[#allocation6 + $0x70] sm:$0xff]
    %v87 = vld [vmem:[#allocation6 + $0x78] sm:$0xff]
    %v88 = vld [vmem:[%s2] sm:$0x1]
    %v90 = vperm.slane %v88, 0
    %92 = vmatpush.msra.mxu0 %v87
    %93 = vmatpush.msra.mxu0 %v86
    %94 = vmatpush.msra.mxu0 %v85
    %95 = vmatpush.msra.mxu0 %v84
    %96 = vmatpush.msra.mxu0 %v83
    %97 = vmatpush.msra.mxu0 %v82
    %98 = vmatpush.msra.mxu0 %v81
    %99 = vmatpush.msra.mxu0 %v80
    %100 = vmatpush.msra.mxu0 %v79
    %101 = vmatpush.msra.mxu0 %v78
    %102 = vmatpush.msra.mxu0 %v77
    %103 = vmatpush.msra.mxu0 %v76
    %104 = vmatpush.msra.mxu0 %v75
    %105 = vmatpush.msra.mxu0 %v74
    %106 = vmatpush.msra.mxu0 %v73
    %107 = vmatpush.msra.mxu0 %v72
    %108 = vmatmul.f32.gmra.mxu0 %v71
    %v109 = vpop.f32.mrf.mxu0
    %v110 = vadd.f32 %v90, %v109
    %111 = vdwg.mxu0
    %v112 = vmax.f32 %v110, 0.0
    %v113 = vld [vmem:[#allocation2] sm:$0xff]
    %v114 = vld [vmem:[#allocation8] sm:$0xff]
    %v115 = vld [vmem:[#allocation8 + $0x8] sm:$0xff]
    %v116 = vld [vmem:[#allocation8 + $0x10] sm:$0xff]
    %v117 = vld [vmem:[#allocation8 + $0x18] sm:$0xff]
    %v118 = vld [vmem:[#allocation8 + $0x20] sm:$0xff]
    %v119 = vld [vmem:[#allocation8 + $0x28] sm:$0xff]
    %v120 = vld [vmem:[#allocation8 + $0x30] sm:$0xff]
    %v121 = vld [vmem:[#allocation8 + $0x38] sm:$0xff]
    %v122 = vld [vmem:[#allocation8 + $0x40] sm:$0xff]
    %v123 = vld [vmem:[#allocation8 + $0x48] sm:$0xff]
    %v124 = vld [vmem:[#allocation8 + $0x50] sm:$0xff]
    %v125 = vld [vmem:[#allocation8 + $0x58] sm:$0xff]
    %v126 = vld [vmem:[#allocation8 + $0x60] sm:$0xff]
    %v127 = vld [vmem:[#allocation8 + $0x68] sm:$0xff]
    %v128 = vld [vmem:[#allocation8 + $0x70] sm:$0xff]
    %v129 = vld [vmem:[#allocation8 + $0x78] sm:$0xff]
    %130 = vmatpush.msra.mxu0 %v129
    %131 = vmatpush.msra.mxu0 %v128
    %132 = vmatpush.msra.mxu0 %v127
    %133 = vmatpush.msra.mxu0 %v126
    %134 = vmatpush.msra.mxu0 %v125
    %135 = vmatpush.msra.mxu0 %v124
    %136 = vmatpush.msra.mxu0 %v123
    %137 = vmatpush.msra.mxu0 %v122
    %138 = vmatpush.msra.mxu0 %v121
    %139 = vmatpush.msra.mxu0 %v120
    %140 = vmatpush.msra.mxu0 %v119
    %141 = vmatpush.msra.mxu0 %v118
    %142 = vmatpush.msra.mxu0 %v117
    %143 = vmatpush.msra.mxu0 %v116
    %144 = vmatpush.msra.mxu0 %v115
    %145 = vmatpush.msra.mxu0 %v114
    %146 = vmatmul.f32.gmra.mxu0 %v112
    %v147 = vpop.f32.mrf.mxu0
    %v148 = vadd.f32 0.0, %v147
    %149 = vdwg.mxu0
    %v150 = vadd.f32 %v113, %v148
    %151 = vst [vmem:[#allocation2] sm:$0xff] %v150
    // Predicated region
    $region38: #{tpu_custom_call.1} parent=1 // pred_check
      %p152 = pneg %p66
    $region39: #{tpu_custom_call.1} parent=1 // pred_check_branch
      %154 = sbr.rel (%p152) target = $region41
    $region40: #{tpu_custom_call.1} parent=1 // pred_region
      %v155 = vld [vmem:[#allocation2] sm:$0xff]
      %v156 = vld [vmem:[%s4] sm:$0x1]
      %v158 = vperm.slane %v156, 0
      %v160 = vadd.f32 %v155, %v158
      %v161 = vmax.f32 %v160, 0.0
      %162 = vst [vmem:[#allocation9] sm:$0xff] %v161
    $region41: #{tpu_custom_call.1} parent=1 // pred_fallthru
      _
    // Predicated region
    $region42: #{tpu_custom_call.1} parent=1 // pred_check
      _
    $region43: #{tpu_custom_call.1} parent=1 // pred_check_branch
      %164 = sbr.rel (0) target = $region45
    $region44: #{tpu_custom_call.1} parent=1 // pred_region
      %166 = vsyncadd [#allocation5], 0
      %s168 = sshll.u32 [#allocation9], 4
      %s169 = int_to_ptr.vmem [resolvable:$true] %s168
      %s170 = sshll.u32 %s5, 4
      %s171 = int_to_ptr.hbm [resolvable:$true] %s170
      %173 = dma.vmem_to_hbm [thread:$0]  %s169, 128, %s171, [#allocation5]
    $region45: #{tpu_custom_call.1} parent=1 // pred_fallthru
      _
    // Predicated region
    $region46: #{tpu_custom_call.1} parent=1 // pred_check
      _
    $region47: #{tpu_custom_call.1} parent=1 // pred_check_branch
      %175 = sbr.rel (0) target = $region49
    $region48: #{tpu_custom_call.1} parent=1 // pred_region
      %177 = dma.done [#allocation5], 128
    $region49: #{tpu_custom_call.1} parent=1 // pred_fallthru
      _
    %178 = vsyncpa [#allocation4], 1
    %179 = vsyncpa [#allocation7], 1
    %180 = vsyncpa [#allocation5], 1

</llo_original>
